<compile_context>
chip_gen: v6e
topology: v6e:2x2x1
jax: 0.10.0
libtpu: 0.0.40
codegen_flags: <defaults>
</compile_context>

<pallas_src>
import functools

import numpy as np
import jax
import jax.numpy as jnp
from jax.experimental import pallas as pl
from jax.experimental.pallas import tpu as pltpu


# ----------------------------------------------------------------------------
# Kernel
# ----------------------------------------------------------------------------
def _basic_block_kernel(x_ref, m_ref, w1_ref, b1_ref, w2_ref, b2_ref, o_ref,
                        patch_ref, *, W, C, L):
    """One grid step processes `L // (H*W)` images packed along the lane axis.

    x_ref:    (1, C, L)  f32 activations (C = padded channels, L = imgs*H*W)
    m_ref:    (9*C, L)   f32 pre-broadcast halo masks (0/1)
    w*_ref:   (C, 9*C)   bf16 conv weights with BN scale folded in
    b*_ref:   (C, 1)     f32 folded BN bias
    o_ref:    (1, C, L)  output
    patch_ref:(9*C, L)   f32 im2col scratch, reused by both convs
    """
    x = x_ref[0].astype(jnp.float32)          # also the identity residual

    def im2col(a):
        # Build the (9*C, L) patch matrix: lane rolls (XLU) + one aligned mask
        # multiply per tap (VPU), stored tile-aligned into scratch.
        k = 0
        for dh in (-1, 0, 1):
            for dw in (-1, 0, 1):
                shift = (-(dh * W + dw)) % L
                rolled = pltpu.roll(a, shift, axis=1) if shift else a
                if dh == 0 and dw == 0:
                    tap = rolled                              # center mask == 1
                else:
                    tap = rolled * m_ref[k * C:(k + 1) * C, :]
                patch_ref[k * C:(k + 1) * C, :] = tap
                k += 1

    # conv1 (3x3, s=1, p=1) + BN1 (scale folded into w1) + ReLU — stays in VMEM
    im2col(x)
    h = jnp.dot(w1_ref[...], patch_ref[...].astype(jnp.bfloat16),
                preferred_element_type=jnp.float32)
    h = jnp.maximum(h + b1_ref[...], 0.0)

    # conv2 + BN2 + identity residual + final ReLU
    im2col(h)
    y = jnp.dot(w2_ref[...], patch_ref[...].astype(jnp.bfloat16),
                preferred_element_type=jnp.float32)
    y = jnp.maximum(y + b2_ref[...] + x, 0.0)

    o_ref[...] = y.reshape(1, C, L).astype(o_ref.dtype)


# ----------------------------------------------------------------------------
# Host-side helpers
# ----------------------------------------------------------------------------
def _make_tap_masks(H, W):
    """(9, H*W) 0/1 masks: tap (dh,dw) valid where the pad-1 shifted read is in-bounds."""
    m = np.zeros((9, H, W), np.float32)
    k = 0
    for dh in (-1, 0, 1):
        for dw in (-1, 0, 1):
            m[k, max(0, -dh):H - max(0, dh), max(0, -dw):W - max(0, dw)] = 1.0
            k += 1
    return m.reshape(9, H * W)


def _images_per_step(n):
    """One grid step per TensorCore: 2-way split on v7x (2 TCs/chip), otherwise fold
    the whole batch into the lane axis of a single step (v5e/v6e are single-TC)."""
    try:
        kind = jax.devices()[0].device_kind.lower()
        n_tc = 2 if ("v7" in kind or "7x" in kind) else 1
    except Exception:
        n_tc = 1
    g = max(1, n // n_tc)
    while n % g:            # keep the batch evenly divisible
        g -= 1
    return g


def _fold_weight(w_hwio, scale, cpad):
    """(3,3,Cin,Cout) HWIO -> (Cpad, 9*Cpad) bf16 with BN scale folded, tap order (kh,kw,cin)."""
    cin, cout = w_hwio.shape[2], w_hwio.shape[3]
    wt = jnp.transpose(w_hwio, (3, 0, 1, 2)) * scale[:, None, None, None]   # (Cout,3,3,Cin)
    wt = jnp.pad(wt, ((0, cpad - cout), (0, 0), (0, 0), (0, cpad - cin)))
    return wt.reshape(cpad, 9 * cpad).astype(jnp.bfloat16)


# ----------------------------------------------------------------------------
# BasicBlock forward (downsample=False, stride=1) — single fused pallas_call
# ----------------------------------------------------------------------------
def basic_block_forward(x_nchw, params):
    N, C, H, W = x_nchw.shape
    HW = H * W
    assert params["w1"].shape == (3, 3, C, C), "identity-residual path needs Cin == Cout"

    Cp = max(8, ((C + 7) // 8) * 8)           # pad channels to the sublane tile
    G = _images_per_step(N)                   # images packed along lanes per grid step
    NB = N // G
    L = G * HW

    # Activations: pad channels, flatten spatial, pack G images along the lane axis.
    x_pad = jnp.pad(x_nchw.reshape(N, C, HW), ((0, 0), (0, Cp - C), (0, 0)))
    x_grp = x_pad.reshape(NB, G, Cp, HW).transpose(0, 2, 1, 3).reshape(NB, Cp, L)

    # Weights/biases: fold BN scale into conv weights, pad channels, cast MXU inputs to bf16.
    w1m = _fold_weight(params["w1"], params["s1"], Cp)
    w2m = _fold_weight(params["w2"], params["s2"], Cp)
    b1 = jnp.pad(params["b1"], (0, Cp - C)).reshape(Cp, 1)
    b2 = jnp.pad(params["b2"], (0, Cp - C)).reshape(Cp, 1)

    # Halo masks pre-broadcast to the concatenated-tap layout and tiled per image so
    # lane-roll wraparound across image boundaries is zeroed.
    m9 = _make_tap_masks(H, W)                                  # (9, HW)
    mb = np.repeat(m9[:, None, :], Cp, axis=1).reshape(9 * Cp, HW)
    masks = jnp.asarray(np.tile(mb, (1, G)))                    # (9*Cp, L)

    kernel = functools.partial(_basic_block_kernel, W=W, C=Cp, L=L)

    out = pl.pallas_call(
        kernel,
        out_shape=jax.ShapeDtypeStruct((NB, Cp, L), x_nchw.dtype),
        grid=(NB,),
        in_specs=[
            pl.BlockSpec((1, Cp, L), lambda n: (n, 0, 0)),       # x (lane-dense)
            pl.BlockSpec((9 * Cp, L), lambda n: (0, 0)),         # pre-broadcast halo masks
            pl.BlockSpec((Cp, 9 * Cp), lambda n: (0, 0)),        # w1 (BN1 folded, bf16)
            pl.BlockSpec((Cp, 1), lambda n: (0, 0)),             # b1
            pl.BlockSpec((Cp, 9 * Cp), lambda n: (0, 0)),        # w2 (BN2 folded, bf16)
            pl.BlockSpec((Cp, 1), lambda n: (0, 0)),             # b2
        ],
        out_specs=pl.BlockSpec((1, Cp, L), lambda n: (n, 0, 0)),
        scratch_shapes=[pltpu.VMEM((9 * Cp, L), jnp.float32)],   # im2col scratch (reused)
        compiler_params=pltpu.CompilerParams(
            dimension_semantics=("parallel",)),
    )(x_grp, masks, w1m, b1, w2m, b2)

    out = out.reshape(NB, Cp, G, HW).transpose(0, 2, 1, 3).reshape(N, Cp, HW)
    return out[:, :C, :].reshape(N, C, H, W)


# ----------------------------------------------------------------------------
# Parameter construction (deterministic) and pure-JAX reference
# ----------------------------------------------------------------------------
def fold_bn(gamma, beta, mean, var, eps=1e-5):
    scale = gamma / jnp.sqrt(var + eps)
    return scale, beta - mean * scale


def make_params(key, cin, cout):
    ks = jax.random.split(key, 10)
    w1 = 0.1 * jax.random.normal(ks[0], (3, 3, cin, cout), jnp.float32)
    w2 = 0.1 * jax.random.normal(ks[1], (3, 3, cout, cout), jnp.float32)
    g1 = 1.0 + 0.1 * jax.random.normal(ks[2], (cout,), jnp.float32)
    b1 = 0.1 * jax.random.normal(ks[3], (cout,), jnp.float32)
    m1 = 0.05 * jax.random.normal(ks[4], (cout,), jnp.float32)
    v1 = jnp.abs(1.0 + 0.1 * jax.random.normal(ks[5], (cout,), jnp.float32))
    g2 = 1.0 + 0.1 * jax.random.normal(ks[6], (cout,), jnp.float32)
    b2 = 0.1 * jax.random.normal(ks[7], (cout,), jnp.float32)
    m2 = 0.05 * jax.random.normal(ks[8], (cout,), jnp.float32)
    v2 = jnp.abs(1.0 + 0.1 * jax.random.normal(ks[9], (cout,), jnp.float32))
    s1, bb1 = fold_bn(g1, b1, m1, v1)
    s2, bb2 = fold_bn(g2, b2, m2, v2)
    return {"w1": w1, "s1": s1, "b1": bb1, "w2": w2, "s2": s2, "b2": bb2}


def ref_forward(x_nchw, params):
    def conv_bn(x, w, s, b, relu):
        y = jax.lax.conv_general_dilated(
            x, w, window_strides=(1, 1), padding=((1, 1), (1, 1)),
            dimension_numbers=("NCHW", "HWIO", "NCHW"))
        y = y * s[None, :, None, None] + b[None, :, None, None]
        return jnp.maximum(y, 0.0) if relu else y

    h = conv_bn(x_nchw, params["w1"], params["s1"], params["b1"], True)
    y = conv_bn(h, params["w2"], params["s2"], params["b2"], False)
    y = y + x_nchw
    return jnp.maximum(y, 0.0)


if __name__ == "__main__":
    key = jax.random.PRNGKey(0)
    k_x, k_p = jax.random.split(key)

    N, C, H, W = 2, 4, 16, 16  # BasicBlock(in=4, out=4, k=3, stride=1, downsample=False)
    x = jax.random.normal(k_x, (N, C, H, W), jnp.float32)
    params = make_params(k_p, C, C)

    out = jax.block_until_ready(basic_block_forward(x, params))
    ref = jax.block_until_ready(ref_forward(x, params))

    assert out.shape == (N, C, H, W)
    # bf16 MXU inputs (f32 accumulate) => tolerance loosened vs pure-f32 reference.
    assert jnp.allclose(out, ref, atol=5e-2, rtol=5e-2), (
        float(jnp.max(jnp.abs(out - ref))))
    print("KERNEL_OK")
</pallas_src>

<mosaic_0001>
module attributes {stable_mosaic.version = 11 : i64} {
  func.func @_basic_block_kernel(%arg0: i32, %arg1: memref<1x8x512xf32, #tpu.memory_space<vmem>>, %arg2: memref<72x512xf32, #tpu.memory_space<vmem>>, %arg3: memref<8x72xbf16, #tpu.memory_space<vmem>>, %arg4: memref<8x1xf32, #tpu.memory_space<vmem>>, %arg5: memref<8x72xbf16, #tpu.memory_space<vmem>>, %arg6: memref<8x1xf32, #tpu.memory_space<vmem>>, %arg7: memref<1x8x512xf32, #tpu.memory_space<vmem>>, %arg8: memref<72x512xf32, #tpu.memory_space<vmem>>) attributes {dimension_semantics = [#tpu.dimension_semantics<parallel>], iteration_bounds = array<i64: 1>, scalar_prefetch = 0 : i64, scratch_operands = 1 : i64, tpu.core_type = #tpu.core_type<tc>, window_params = [{transform_indices = @transform_0, window_bounds = array<i64: 1, 8, 512>}, {pipeline_mode = #tpu.pipeline_mode<synchronous>, transform_indices = @transform_1, window_bounds = array<i64: 72, 512>}, {pipeline_mode = #tpu.pipeline_mode<synchronous>, transform_indices = @transform_2, window_bounds = array<i64: 8, 72>}, {pipeline_mode = #tpu.pipeline_mode<synchronous>, transform_indices = @transform_3, window_bounds = array<i64: 8, 1>}, {pipeline_mode = #tpu.pipeline_mode<synchronous>, transform_indices = @transform_4, window_bounds = array<i64: 8, 72>}, {pipeline_mode = #tpu.pipeline_mode<synchronous>, transform_indices = @transform_5, window_bounds = array<i64: 8, 1>}, {transform_indices = @transform_6, window_bounds = array<i64: 1, 8, 512>}]} {
    %c0 = arith.constant 0 : index
    %c0_0 = arith.constant 0 : index
    %c0_1 = arith.constant 0 : index
    %0 = vector.load %arg1[%c0, %c0_0, %c0_1] : memref<1x8x512xf32, #tpu.memory_space<vmem>>, vector<1x8x512xf32>
    %1 = vector.shape_cast %0 : vector<1x8x512xf32> to vector<8x512xf32>
    %c17_i32 = arith.constant 17 : i32
    %2 = tpu.dynamic_rotate %1 by %c17_i32 dim 1 : vector<8x512xf32>, i32 -> vector<8x512xf32>
    %c0_2 = arith.constant 0 : index
    %c0_3 = arith.constant 0 : index
    %3 = vector.load %arg2[%c0_2, %c0_3] : memref<72x512xf32, #tpu.memory_space<vmem>>, vector<8x512xf32>
    %4 = arith.mulf %2, %3 : vector<8x512xf32>
    %c0_4 = arith.constant 0 : index
    %c0_5 = arith.constant 0 : index
    %5 = vector.load %arg8[%c0_4, %c0_5] : memref<72x512xf32, #tpu.memory_space<vmem>>, vector<8x512xf32>
    tpu.vector_store %arg8[%c0_4, %c0_5], %4 {strides = array<i32>} : memref<72x512xf32, #tpu.memory_space<vmem>>, vector<8x512xf32>,
    %c16_i32 = arith.constant 16 : i32
    %6 = tpu.dynamic_rotate %1 by %c16_i32 dim 1 : vector<8x512xf32>, i32 -> vector<8x512xf32>
    %c8 = arith.constant 8 : index
    %c0_6 = arith.constant 0 : index
    %7 = vector.load %arg2[%c8, %c0_6] : memref<72x512xf32, #tpu.memory_space<vmem>>, vector<8x512xf32>
    %8 = arith.mulf %6, %7 : vector<8x512xf32>
    %c8_7 = arith.constant 8 : index
    %c0_8 = arith.constant 0 : index
    %9 = vector.load %arg8[%c8_7, %c0_8] : memref<72x512xf32, #tpu.memory_space<vmem>>, vector<8x512xf32>
    tpu.vector_store %arg8[%c8_7, %c0_8], %8 {strides = array<i32>} : memref<72x512xf32, #tpu.memory_space<vmem>>, vector<8x512xf32>,
    %c15_i32 = arith.constant 15 : i32
    %10 = tpu.dynamic_rotate %1 by %c15_i32 dim 1 : vector<8x512xf32>, i32 -> vector<8x512xf32>
    %c16 = arith.constant 16 : index
    %c0_9 = arith.constant 0 : index
    %11 = vector.load %arg2[%c16, %c0_9] : memref<72x512xf32, #tpu.memory_space<vmem>>, vector<8x512xf32>
    %12 = arith.mulf %10, %11 : vector<8x512xf32>
    %c16_10 = arith.constant 16 : index
    %c0_11 = arith.constant 0 : index
    %13 = vector.load %arg8[%c16_10, %c0_11] : memref<72x512xf32, #tpu.memory_space<vmem>>, vector<8x512xf32>
    tpu.vector_store %arg8[%c16_10, %c0_11], %12 {strides = array<i32>} : memref<72x512xf32, #tpu.memory_space<vmem>>, vector<8x512xf32>,
    %c1_i32 = arith.constant 1 : i32
    %14 = tpu.dynamic_rotate %1 by %c1_i32 dim 1 : vector<8x512xf32>, i32 -> vector<8x512xf32>
    %c24 = arith.constant 24 : index
    %c0_12 = arith.constant 0 : index
    %15 = vector.load %arg2[%c24, %c0_12] : memref<72x512xf32, #tpu.memory_space<vmem>>, vector<8x512xf32>
    %16 = arith.mulf %14, %15 : vector<8x512xf32>
    %c24_13 = arith.constant 24 : index
    %c0_14 = arith.constant 0 : index
    %17 = vector.load %arg8[%c24_13, %c0_14] : memref<72x512xf32, #tpu.memory_space<vmem>>, vector<8x512xf32>
    tpu.vector_store %arg8[%c24_13, %c0_14], %16 {strides = array<i32>} : memref<72x512xf32, #tpu.memory_space<vmem>>, vector<8x512xf32>,
    %c32 = arith.constant 32 : index
    %c0_15 = arith.constant 0 : index
    %18 = vector.load %arg8[%c32, %c0_15] : memref<72x512xf32, #tpu.memory_space<vmem>>, vector<8x512xf32>
    tpu.vector_store %arg8[%c32, %c0_15], %1 {strides = array<i32>} : memref<72x512xf32, #tpu.memory_space<vmem>>, vector<8x512xf32>,
    %c511_i32 = arith.constant 511 : i32
    %19 = tpu.dynamic_rotate %1 by %c511_i32 dim 1 : vector<8x512xf32>, i32 -> vector<8x512xf32>
    %c40 = arith.constant 40 : index
    %c0_16 = arith.constant 0 : index
    %20 = vector.load %arg2[%c40, %c0_16] : memref<72x512xf32, #tpu.memory_space<vmem>>, vector<8x512xf32>
    %21 = arith.mulf %19, %20 : vector<8x512xf32>
    %c40_17 = arith.constant 40 : index
    %c0_18 = arith.constant 0 : index
    %22 = vector.load %arg8[%c40_17, %c0_18] : memref<72x512xf32, #tpu.memory_space<vmem>>, vector<8x512xf32>
    tpu.vector_store %arg8[%c40_17, %c0_18], %21 {strides = array<i32>} : memref<72x512xf32, #tpu.memory_space<vmem>>, vector<8x512xf32>,
    %c497_i32 = arith.constant 497 : i32
    %23 = tpu.dynamic_rotate %1 by %c497_i32 dim 1 : vector<8x512xf32>, i32 -> vector<8x512xf32>
    %c48 = arith.constant 48 : index
    %c0_19 = arith.constant 0 : index
    %24 = vector.load %arg2[%c48, %c0_19] : memref<72x512xf32, #tpu.memory_space<vmem>>, vector<8x512xf32>
    %25 = arith.mulf %23, %24 : vector<8x512xf32>
    %c48_20 = arith.constant 48 : index
    %c0_21 = arith.constant 0 : index
    %26 = vector.load %arg8[%c48_20, %c0_21] : memref<72x512xf32, #tpu.memory_space<vmem>>, vector<8x512xf32>
    tpu.vector_store %arg8[%c48_20, %c0_21], %25 {strides = array<i32>} : memref<72x512xf32, #tpu.memory_space<vmem>>, vector<8x512xf32>,
    %c496_i32 = arith.constant 496 : i32
    %27 = tpu.dynamic_rotate %1 by %c496_i32 dim 1 : vector<8x512xf32>, i32 -> vector<8x512xf32>
    %c56 = arith.constant 56 : index
    %c0_22 = arith.constant 0 : index
    %28 = vector.load %arg2[%c56, %c0_22] : memref<72x512xf32, #tpu.memory_space<vmem>>, vector<8x512xf32>
    %29 = arith.mulf %27, %28 : vector<8x512xf32>
    %c56_23 = arith.constant 56 : index
    %c0_24 = arith.constant 0 : index
    %30 = vector.load %arg8[%c56_23, %c0_24] : memref<72x512xf32, #tpu.memory_space<vmem>>, vector<8x512xf32>
    tpu.vector_store %arg8[%c56_23, %c0_24], %29 {strides = array<i32>} : memref<72x512xf32, #tpu.memory_space<vmem>>, vector<8x512xf32>,
    %c495_i32 = arith.constant 495 : i32
    %31 = tpu.dynamic_rotate %1 by %c495_i32 dim 1 : vector<8x512xf32>, i32 -> vector<8x512xf32>
    %c64 = arith.constant 64 : index
    %c0_25 = arith.constant 0 : index
    %32 = vector.load %arg2[%c64, %c0_25] : memref<72x512xf32, #tpu.memory_space<vmem>>, vector<8x512xf32>
    %33 = arith.mulf %31, %32 : vector<8x512xf32>
    %c64_26 = arith.constant 64 : index
    %c0_27 = arith.constant 0 : index
    %34 = vector.load %arg8[%c64_26, %c0_27] : memref<72x512xf32, #tpu.memory_space<vmem>>, vector<8x512xf32>
    tpu.vector_store %arg8[%c64_26, %c0_27], %33 {strides = array<i32>} : memref<72x512xf32, #tpu.memory_space<vmem>>, vector<8x512xf32>,
    %c0_28 = arith.constant 0 : index
    %c0_29 = arith.constant 0 : index
    %35 = vector.load %arg3[%c0_28, %c0_29] : memref<8x72xbf16, #tpu.memory_space<vmem>>, vector<8x72xbf16>
    %c0_30 = arith.constant 0 : index
    %c0_31 = arith.constant 0 : index
    %36 = vector.load %arg8[%c0_30, %c0_31] : memref<72x512xf32, #tpu.memory_space<vmem>>, vector<72x512xf32>
    %37 = arith.truncf %36 : vector<72x512xf32> to vector<72x512xbf16>
    %cst = arith.constant dense<0.000000e+00> : vector<8x512xf32>
    %38 = tpu.matmul %35, %37, %cst {dimension_numbers = #tpu.dot_dimension_numbers<[1], [0], [0], [1], [0, 0, 1, 1], [], []>} : vector<8x72xbf16>, vector<72x512xbf16>, vector<8x512xf32> -> vector<8x512xf32>
    %c0_32 = arith.constant 0 : index
    %c0_33 = arith.constant 0 : index
    %39 = vector.load %arg4[%c0_32, %c0_33] : memref<8x1xf32, #tpu.memory_space<vmem>>, vector<8x1xf32>
    %40 = vector.broadcast %39 : vector<8x1xf32> to vector<8x512xf32>
    %41 = arith.addf %38, %40 : vector<8x512xf32>
    %cst_34 = arith.constant 0.000000e+00 : f32
    %42 = vector.broadcast %cst_34 : f32 to vector<8x512xf32>
    %43 = arith.maximumf %41, %42 : vector<8x512xf32>
    %c17_i32_35 = arith.constant 17 : i32
    %44 = tpu.dynamic_rotate %43 by %c17_i32_35 dim 1 : vector<8x512xf32>, i32 -> vector<8x512xf32>
    %c0_36 = arith.constant 0 : index
    %c0_37 = arith.constant 0 : index
    %45 = vector.load %arg2[%c0_36, %c0_37] : memref<72x512xf32, #tpu.memory_space<vmem>>, vector<8x512xf32>
    %46 = arith.mulf %44, %45 : vector<8x512xf32>
    %c0_38 = arith.constant 0 : index
    %c0_39 = arith.constant 0 : index
    %47 = vector.load %arg8[%c0_38, %c0_39] : memref<72x512xf32, #tpu.memory_space<vmem>>, vector<8x512xf32>
    tpu.vector_store %arg8[%c0_38, %c0_39], %46 {strides = array<i32>} : memref<72x512xf32, #tpu.memory_space<vmem>>, vector<8x512xf32>,
    %c16_i32_40 = arith.constant 16 : i32
    %48 = tpu.dynamic_rotate %43 by %c16_i32_40 dim 1 : vector<8x512xf32>, i32 -> vector<8x512xf32>
    %c8_41 = arith.constant 8 : index
    %c0_42 = arith.constant 0 : index
    %49 = vector.load %arg2[%c8_41, %c0_42] : memref<72x512xf32, #tpu.memory_space<vmem>>, vector<8x512xf32>
    %50 = arith.mulf %48, %49 : vector<8x512xf32>
    %c8_43 = arith.constant 8 : index
    %c0_44 = arith.constant 0 : index
    %51 = vector.load %arg8[%c8_43, %c0_44] : memref<72x512xf32, #tpu.memory_space<vmem>>, vector<8x512xf32>
    tpu.vector_store %arg8[%c8_43, %c0_44], %50 {strides = array<i32>} : memref<72x512xf32, #tpu.memory_space<vmem>>, vector<8x512xf32>,
    %c15_i32_45 = arith.constant 15 : i32
    %52 = tpu.dynamic_rotate %43 by %c15_i32_45 dim 1 : vector<8x512xf32>, i32 -> vector<8x512xf32>
    %c16_46 = arith.constant 16 : index
    %c0_47 = arith.constant 0 : index
    %53 = vector.load %arg2[%c16_46, %c0_47] : memref<72x512xf32, #tpu.memory_space<vmem>>, vector<8x512xf32>
    %54 = arith.mulf %52, %53 : vector<8x512xf32>
    %c16_48 = arith.constant 16 : index
    %c0_49 = arith.constant 0 : index
    %55 = vector.load %arg8[%c16_48, %c0_49] : memref<72x512xf32, #tpu.memory_space<vmem>>, vector<8x512xf32>
    tpu.vector_store %arg8[%c16_48, %c0_49], %54 {strides = array<i32>} : memref<72x512xf32, #tpu.memory_space<vmem>>, vector<8x512xf32>,
    %c1_i32_50 = arith.constant 1 : i32
    %56 = tpu.dynamic_rotate %43 by %c1_i32_50 dim 1 : vector<8x512xf32>, i32 -> vector<8x512xf32>
    %c24_51 = arith.constant 24 : index
    %c0_52 = arith.constant 0 : index
    %57 = vector.load %arg2[%c24_51, %c0_52] : memref<72x512xf32, #tpu.memory_space<vmem>>, vector<8x512xf32>
    %58 = arith.mulf %56, %57 : vector<8x512xf32>
    %c24_53 = arith.constant 24 : index
    %c0_54 = arith.constant 0 : index
    %59 = vector.load %arg8[%c24_53, %c0_54] : memref<72x512xf32, #tpu.memory_space<vmem>>, vector<8x512xf32>
    tpu.vector_store %arg8[%c24_53, %c0_54], %58 {strides = array<i32>} : memref<72x512xf32, #tpu.memory_space<vmem>>, vector<8x512xf32>,
    %c32_55 = arith.constant 32 : index
    %c0_56 = arith.constant 0 : index
    %60 = vector.load %arg8[%c32_55, %c0_56] : memref<72x512xf32, #tpu.memory_space<vmem>>, vector<8x512xf32>
    tpu.vector_store %arg8[%c32_55, %c0_56], %43 {strides = array<i32>} : memref<72x512xf32, #tpu.memory_space<vmem>>, vector<8x512xf32>,
    %c511_i32_57 = arith.constant 511 : i32
    %61 = tpu.dynamic_rotate %43 by %c511_i32_57 dim 1 : vector<8x512xf32>, i32 -> vector<8x512xf32>
    %c40_58 = arith.constant 40 : index
    %c0_59 = arith.constant 0 : index
    %62 = vector.load %arg2[%c40_58, %c0_59] : memref<72x512xf32, #tpu.memory_space<vmem>>, vector<8x512xf32>
    %63 = arith.mulf %61, %62 : vector<8x512xf32>
    %c40_60 = arith.constant 40 : index
    %c0_61 = arith.constant 0 : index
    %64 = vector.load %arg8[%c40_60, %c0_61] : memref<72x512xf32, #tpu.memory_space<vmem>>, vector<8x512xf32>
    tpu.vector_store %arg8[%c40_60, %c0_61], %63 {strides = array<i32>} : memref<72x512xf32, #tpu.memory_space<vmem>>, vector<8x512xf32>,
    %c497_i32_62 = arith.constant 497 : i32
    %65 = tpu.dynamic_rotate %43 by %c497_i32_62 dim 1 : vector<8x512xf32>, i32 -> vector<8x512xf32>
    %c48_63 = arith.constant 48 : index
    %c0_64 = arith.constant 0 : index
    %66 = vector.load %arg2[%c48_63, %c0_64] : memref<72x512xf32, #tpu.memory_space<vmem>>, vector<8x512xf32>
    %67 = arith.mulf %65, %66 : vector<8x512xf32>
    %c48_65 = arith.constant 48 : index
    %c0_66 = arith.constant 0 : index
    %68 = vector.load %arg8[%c48_65, %c0_66] : memref<72x512xf32, #tpu.memory_space<vmem>>, vector<8x512xf32>
    tpu.vector_store %arg8[%c48_65, %c0_66], %67 {strides = array<i32>} : memref<72x512xf32, #tpu.memory_space<vmem>>, vector<8x512xf32>,
    %c496_i32_67 = arith.constant 496 : i32
    %69 = tpu.dynamic_rotate %43 by %c496_i32_67 dim 1 : vector<8x512xf32>, i32 -> vector<8x512xf32>
    %c56_68 = arith.constant 56 : index
    %c0_69 = arith.constant 0 : index
    %70 = vector.load %arg2[%c56_68, %c0_69] : memref<72x512xf32, #tpu.memory_space<vmem>>, vector<8x512xf32>
    %71 = arith.mulf %69, %70 : vector<8x512xf32>
    %c56_70 = arith.constant 56 : index
    %c0_71 = arith.constant 0 : index
    %72 = vector.load %arg8[%c56_70, %c0_71] : memref<72x512xf32, #tpu.memory_space<vmem>>, vector<8x512xf32>
    tpu.vector_store %arg8[%c56_70, %c0_71], %71 {strides = array<i32>} : memref<72x512xf32, #tpu.memory_space<vmem>>, vector<8x512xf32>,
    %c495_i32_72 = arith.constant 495 : i32
    %73 = tpu.dynamic_rotate %43 by %c495_i32_72 dim 1 : vector<8x512xf32>, i32 -> vector<8x512xf32>
    %c64_73 = arith.constant 64 : index
    %c0_74 = arith.constant 0 : index
    %74 = vector.load %arg2[%c64_73, %c0_74] : memref<72x512xf32, #tpu.memory_space<vmem>>, vector<8x512xf32>
    %75 = arith.mulf %73, %74 : vector<8x512xf32>
    %c64_75 = arith.constant 64 : index
    %c0_76 = arith.constant 0 : index
    %76 = vector.load %arg8[%c64_75, %c0_76] : memref<72x512xf32, #tpu.memory_space<vmem>>, vector<8x512xf32>
    tpu.vector_store %arg8[%c64_75, %c0_76], %75 {strides = array<i32>} : memref<72x512xf32, #tpu.memory_space<vmem>>, vector<8x512xf32>,
    %c0_77 = arith.constant 0 : index
    %c0_78 = arith.constant 0 : index
    %77 = vector.load %arg5[%c0_77, %c0_78] : memref<8x72xbf16, #tpu.memory_space<vmem>>, vector<8x72xbf16>
    %c0_79 = arith.constant 0 : index
    %c0_80 = arith.constant 0 : index
    %78 = vector.load %arg8[%c0_79, %c0_80] : memref<72x512xf32, #tpu.memory_space<vmem>>, vector<72x512xf32>
    %79 = arith.truncf %78 : vector<72x512xf32> to vector<72x512xbf16>
    %cst_81 = arith.constant dense<0.000000e+00> : vector<8x512xf32>
    %80 = tpu.matmul %77, %79, %cst_81 {dimension_numbers = #tpu.dot_dimension_numbers<[1], [0], [0], [1], [0, 0, 1, 1], [], []>} : vector<8x72xbf16>, vector<72x512xbf16>, vector<8x512xf32> -> vector<8x512xf32>
    %c0_82 = arith.constant 0 : index
    %c0_83 = arith.constant 0 : index
    %81 = vector.load %arg6[%c0_82, %c0_83] : memref<8x1xf32, #tpu.memory_space<vmem>>, vector<8x1xf32>
    %82 = vector.broadcast %81 : vector<8x1xf32> to vector<8x512xf32>
    %83 = arith.addf %80, %82 : vector<8x512xf32>
    %84 = arith.addf %83, %1 : vector<8x512xf32>
    %cst_84 = arith.constant 0.000000e+00 : f32
    %85 = vector.broadcast %cst_84 : f32 to vector<8x512xf32>
    %86 = arith.maximumf %84, %85 : vector<8x512xf32>
    %87 = vector.shape_cast %86 : vector<8x512xf32> to vector<1x8x512xf32>
    %c0_85 = arith.constant 0 : index
    %c0_86 = arith.constant 0 : index
    %c0_87 = arith.constant 0 : index
    %88 = vector.load %arg7[%c0_85, %c0_86, %c0_87] : memref<1x8x512xf32, #tpu.memory_space<vmem>>, vector<1x8x512xf32>
    tpu.vector_store %arg7[%c0_85, %c0_86, %c0_87], %87 {strides = array<i32>} : memref<1x8x512xf32, #tpu.memory_space<vmem>>, vector<1x8x512xf32>,
    return
  }
  func.func @transform_0(%arg0: i32) -> (i32, i32, i32) {
    %c0_i32 = arith.constant 0 : i32
    %c0_i32_0 = arith.constant 0 : i32
    %c0_i32_1 = arith.constant 0 : i32
    return %arg0, %c0_i32, %c0_i32_0 : i32, i32, i32
  }
  func.func @transform_1(%arg0: i32) -> (i32, i32) {
    %c0_i32 = arith.constant 0 : i32
    %c0_i32_0 = arith.constant 0 : i32
    %c0_i32_1 = arith.constant 0 : i32
    return %c0_i32, %c0_i32_0 : i32, i32
  }
  func.func @transform_2(%arg0: i32) -> (i32, i32) {
    %c0_i32 = arith.constant 0 : i32
    %c0_i32_0 = arith.constant 0 : i32
    %c0_i32_1 = arith.constant 0 : i32
    return %c0_i32, %c0_i32_0 : i32, i32
  }
  func.func @transform_3(%arg0: i32) -> (i32, i32) {
    %c0_i32 = arith.constant 0 : i32
    %c0_i32_0 = arith.constant 0 : i32
    %c0_i32_1 = arith.constant 0 : i32
    return %c0_i32, %c0_i32_0 : i32, i32
  }
  func.func @transform_4(%arg0: i32) -> (i32, i32) {
    %c0_i32 = arith.constant 0 : i32
    %c0_i32_0 = arith.constant 0 : i32
    %c0_i32_1 = arith.constant 0 : i32
    return %c0_i32, %c0_i32_0 : i32, i32
  }
  func.func @transform_5(%arg0: i32) -> (i32, i32) {
    %c0_i32 = arith.constant 0 : i32
    %c0_i32_0 = arith.constant 0 : i32
    %c0_i32_1 = arith.constant 0 : i32
    return %c0_i32, %c0_i32_0 : i32, i32
  }
  func.func @transform_6(%arg0: i32) -> (i32, i32, i32) {
    %c0_i32 = arith.constant 0 : i32
    %c0_i32_0 = arith.constant 0 : i32
    %c0_i32_1 = arith.constant 0 : i32
    return %arg0, %c0_i32, %c0_i32_0 : i32, i32, i32
  }
}

</mosaic_0001>

<llo_original>
// kernel: tpu_custom_call.1
$region0: #{tpu_custom_call.1}
  #allocation0 [shape = 'u32[]', space=smem, size = 0x4, offset = 0x4, fixed_abs, tag = 'smem constant byte address 0x4 - core index']
  #allocation1 [shape = 'u32[144,128]{1,0:T(1,128)}', space=vmem, size = 0x12000, scoped, tag = 'internal scratch']
  #allocation2 [shape = 'f32[72,512]{1,0:T(8,128)}', space=vmem, size = 0x24000, scoped, tag = 'scratch operand']
  %s0 = inlined_call_operand.hbm [shape: f32[1,8,512], index: 0, kind: input, shape index: {}]
  %s1 = inlined_call_operand.hbm [shape: f32[72,512], index: 1, kind: input, shape index: {}]
  %s2 = inlined_call_operand.vmem [shape: bf16[8,72], index: 2, kind: input, shape index: {}]
  %s3 = inlined_call_operand.vmem [shape: f32[8,1], index: 3, kind: input, shape index: {}]
  %s4 = inlined_call_operand.vmem [shape: bf16[8,72], index: 4, kind: input, shape index: {}]
  %s5 = inlined_call_operand.vmem [shape: f32[8,1], index: 5, kind: input, shape index: {}]
  %s6 = inlined_call_operand.hbm [shape: f32[1,8,512], index: 6, kind: output, shape index: {}]
  %s7 = sld [smem:[#allocation0]]
  $region42: #{tpu_custom_call.1} parent=0
    _
  %s9 = ssub.s32 1, %s7
  %s10 = scalar_select 0, %s9, %s7
  $region1: #{tpu_custom_call.1} parent=0
    #allocation3 [shape = 'u8[16384]{0}', space=vmem, size = 0x4000, scoped, tag = 'input window, operand 0, single buffered']
    #allocation4 [shape = 's32[1]{0}', space=sflag, size = 0x4, scoped, tag = 'scoped memory for tpu_custom_call.1']
    #allocation5 [shape = 's32[1]{0}', space=sflag, size = 0x4, scoped, tag = 'scoped memory for tpu_custom_call.1']
    #allocation6 [shape = 'u8[147456]{0}', space=vmem, size = 0x24000, scoped, tag = 'input window, operand 1, single buffered']
    #allocation7 [shape = 's32[1]{0}', space=sflag, size = 0x4, scoped, tag = 'scoped memory for tpu_custom_call.1']
    #allocation8 [shape = 'u8[16384]{0}', space=vmem, size = 0x4000, scoped, tag = 'output window, operand 0, single buffered']
    %11 = vsyncpa [#allocation4], 0
    %12 = vsyncpa [#allocation7], 0
    %13 = vsyncpa [#allocation5], 0
    // Predicated region
    $region2: #{tpu_custom_call.1} parent=1 // pred_check
      _
    $region3: #{tpu_custom_call.1} parent=1 // pred_check_branch
      %15 = sbr.rel (0) target = $region5
    $region4: #{tpu_custom_call.1} parent=1 // pred_region
      %s17 = ssub.s32 512, 512
      %18 = vsyncadd [#allocation4], %s17
      %s20 = sshll.u32 [#allocation3], 4
      %s21 = int_to_ptr.vmem [resolvable:$true] %s20
      %23 = dma.hbm_to_vmem [thread:$0]  %s0, 512, %s21, [#allocation4]
    $region5: #{tpu_custom_call.1} parent=1 // pred_fallthru
      _
    // Predicated region
    $region6: #{tpu_custom_call.1} parent=1 // pred_check
      _
    $region7: #{tpu_custom_call.1} parent=1 // pred_check_branch
      %25 = sbr.rel (0) target = $region9
    $region8: #{tpu_custom_call.1} parent=1 // pred_region
      %s27 = ssub.s32 4608, 4608
      %28 = vsyncadd [#allocation7], %s27
      %s29 = sshll.u32 [#allocation6], 4
      %s30 = int_to_ptr.vmem [resolvable:$true] %s29
      %35 = dma.hbm_to_vmem [thread:$0]  %s1, 4608, %s30, [#allocation7], 512, 512, 32
    $region9: #{tpu_custom_call.1} parent=1 // pred_fallthru
      _
    // Predicated region
    $region10: #{tpu_custom_call.1} parent=1 // pred_check
      _
    $region11: #{tpu_custom_call.1} parent=1 // pred_check_branch
      %37 = sbr.rel (0) target = $region13
    $region12: #{tpu_custom_call.1} parent=1 // pred_region
      _
    $region13: #{tpu_custom_call.1} parent=1 // pred_fallthru
      _
    // Predicated region
    $region14: #{tpu_custom_call.1} parent=1 // pred_check
      _
    $region15: #{tpu_custom_call.1} parent=1 // pred_check_branch
      %39 = sbr.rel (0) target = $region17
    $region16: #{tpu_custom_call.1} parent=1 // pred_region
      _
    $region17: #{tpu_custom_call.1} parent=1 // pred_fallthru
      _
    // Predicated region
    $region18: #{tpu_custom_call.1} parent=1 // pred_check
      _
    $region19: #{tpu_custom_call.1} parent=1 // pred_check_branch
      %41 = sbr.rel (0) target = $region21
    $region20: #{tpu_custom_call.1} parent=1 // pred_region
      _
    $region21: #{tpu_custom_call.1} parent=1 // pred_fallthru
      _
    // Predicated region
    $region22: #{tpu_custom_call.1} parent=1 // pred_check
      _
    $region23: #{tpu_custom_call.1} parent=1 // pred_check_branch
      %43 = sbr.rel (0) target = $region25
    $region24: #{tpu_custom_call.1} parent=1 // pred_region
      _
    $region25: #{tpu_custom_call.1} parent=1 // pred_fallthru
      _
    // Predicated region
    $region26: #{tpu_custom_call.1} parent=1 // pred_check
      _
    $region27: #{tpu_custom_call.1} parent=1 // pred_check_branch
      %45 = sbr.rel (0) target = $region29
    $region28: #{tpu_custom_call.1} parent=1 // pred_region
      %46 = dma.done [#allocation4], 512
    $region29: #{tpu_custom_call.1} parent=1 // pred_fallthru
      _
    // Predicated region
    $region30: #{tpu_custom_call.1} parent=1 // pred_check
      _
    $region31: #{tpu_custom_call.1} parent=1 // pred_check_branch
      %48 = sbr.rel (0) target = $region33
    $region32: #{tpu_custom_call.1} parent=1 // pred_region
      %49 = dma.done [#allocation7], 4608
    $region33: #{tpu_custom_call.1} parent=1 // pred_fallthru
      _
    %v51 = vld [vmem:[#allocation3] sm:$0xff]
    %v52 = vld [vmem:[#allocation3 + $0x8] sm:$0xff]
    %v53 = vld [vmem:[#allocation3 + $0x10] sm:$0xff]
    %v54 = vld [vmem:[#allocation3 + $0x18] sm:$0xff]
    %55 = vrot.lane.b32.xlu0 %v51, 17
    %v56 = vpop.permute.xlu0 %55
    %57 = vrot.lane.b32.xlu0 %v52, 17
    %v58 = vpop.permute.xlu0 %57
    %59 = vrot.lane.b32.xlu0 %v53, 17
    %v60 = vpop.permute.xlu0 %59
    %61 = vrot.lane.b32.xlu0 %v54, 17
    %v62 = vpop.permute.xlu0 %61
    %v63 = vlaneseq
    %v64 = vand.u32 %v63, 127
    %vm65 = vcmp.lt.s32.totalorder %v64, 17
    %v66 = vsel %vm65, %v60, %v62
    %v67 = vsel %vm65, %v58, %v60
    %v68 = vsel %vm65, %v56, %v58
    %v69 = vsel %vm65, %v62, %v56
    %v70 = vld [vmem:[#allocation6] sm:$0xff]
    %v71 = vld [vmem:[#allocation6 + $0x8] sm:$0xff]
    %v72 = vld [vmem:[#allocation6 + $0x10] sm:$0xff]
    %v73 = vld [vmem:[#allocation6 + $0x18] sm:$0xff]
    %v74 = vmul.f32 %v69, %v70
    %v75 = vmul.f32 %v68, %v71
    %v76 = vmul.f32 %v67, %v72
    %v77 = vmul.f32 %v66, %v73
    %78 = vst [vmem:[#allocation2] sm:$0xff] %v74
    %79 = vst [vmem:[#allocation2 + $0x8] sm:$0xff] %v75
    %80 = vst [vmem:[#allocation2 + $0x10] sm:$0xff] %v76
    %81 = vst [vmem:[#allocation2 + $0x18] sm:$0xff] %v77
    %82 = vrot.lane.b32.xlu0 %v51, 16
    %v83 = vpop.permute.xlu0 %82
    %84 = vrot.lane.b32.xlu0 %v52, 16
    %v85 = vpop.permute.xlu0 %84
    %86 = vrot.lane.b32.xlu0 %v53, 16
    %v87 = vpop.permute.xlu0 %86
    %88 = vrot.lane.b32.xlu0 %v54, 16
    %v89 = vpop.permute.xlu0 %88
    %vm90 = vcmp.lt.s32.totalorder %v64, 16
    %v91 = vsel %vm90, %v87, %v89
    %v92 = vsel %vm90, %v85, %v87
    %v93 = vsel %vm90, %v83, %v85
    %v94 = vsel %vm90, %v89, %v83
    %v95 = vld [vmem:[#allocation6 + $0x20] sm:$0xff]
    %v96 = vld [vmem:[#allocation6 + $0x28] sm:$0xff]
    %v97 = vld [vmem:[#allocation6 + $0x30] sm:$0xff]
    %v98 = vld [vmem:[#allocation6 + $0x38] sm:$0xff]
    %v99 = vmul.f32 %v94, %v95
    %v100 = vmul.f32 %v93, %v96
    %v101 = vmul.f32 %v92, %v97
    %v102 = vmul.f32 %v91, %v98
    %103 = vst [vmem:[#allocation2 + $0x20] sm:$0xff] %v99
    %104 = vst [vmem:[#allocation2 + $0x28] sm:$0xff] %v100
    %105 = vst [vmem:[#allocation2 + $0x30] sm:$0xff] %v101
    %106 = vst [vmem:[#allocation2 + $0x38] sm:$0xff] %v102
    %107 = vrot.lane.b32.xlu0 %v51, 15
    %v108 = vpop.permute.xlu0 %107
    %109 = vrot.lane.b32.xlu0 %v52, 15
    %v110 = vpop.permute.xlu0 %109
    %111 = vrot.lane.b32.xlu0 %v53, 15
    %v112 = vpop.permute.xlu0 %111
    %113 = vrot.lane.b32.xlu0 %v54, 15
    %v114 = vpop.permute.xlu0 %113
    %vm115 = vcmp.lt.s32.totalorder %v64, 15
    %v116 = vsel %vm115, %v112, %v114
    %v117 = vsel %vm115, %v110, %v112
    %v118 = vsel %vm115, %v108, %v110
    %v119 = vsel %vm115, %v114, %v108
    %v120 = vld [vmem:[#allocation6 + $0x40] sm:$0xff]
    %v121 = vld [vmem:[#allocation6 + $0x48] sm:$0xff]
    %v122 = vld [vmem:[#allocation6 + $0x50] sm:$0xff]
    %v123 = vld [vmem:[#allocation6 + $0x58] sm:$0xff]
    %v124 = vmul.f32 %v119, %v120
    %v125 = vmul.f32 %v118, %v121
    %v126 = vmul.f32 %v117, %v122
    %v127 = vmul.f32 %v116, %v123
    %128 = vst [vmem:[#allocation2 + $0x40] sm:$0xff] %v124
    %129 = vst [vmem:[#allocation2 + $0x48] sm:$0xff] %v125
    %130 = vst [vmem:[#allocation2 + $0x50] sm:$0xff] %v126
    %131 = vst [vmem:[#allocation2 + $0x58] sm:$0xff] %v127
    %132 = vrot.lane.b32.xlu0 %v51, 1
    %v133 = vpop.permute.xlu0 %132
    %134 = vrot.lane.b32.xlu0 %v52, 1
    %v135 = vpop.permute.xlu0 %134
    %136 = vrot.lane.b32.xlu0 %v53, 1
    %v137 = vpop.permute.xlu0 %136
    %138 = vrot.lane.b32.xlu0 %v54, 1
    %v139 = vpop.permute.xlu0 %138
    %vm140 = vcmp.lt.s32.totalorder %v64, 1
    %v141 = vsel %vm140, %v137, %v139
    %v142 = vsel %vm140, %v135, %v137
    %v143 = vsel %vm140, %v133, %v135
    %v144 = vsel %vm140, %v139, %v133
    %v145 = vld [vmem:[#allocation6 + $0x60] sm:$0xff]
    %v146 = vld [vmem:[#allocation6 + $0x68] sm:$0xff]
    %v147 = vld [vmem:[#allocation6 + $0x70] sm:$0xff]
    %v148 = vld [vmem:[#allocation6 + $0x78] sm:$0xff]
    %v149 = vmul.f32 %v144, %v145
    %v150 = vmul.f32 %v143, %v146
    %v151 = vmul.f32 %v142, %v147
    %v152 = vmul.f32 %v141, %v148
    %153 = vst [vmem:[#allocation2 + $0x60] sm:$0xff] %v149
    %154 = vst [vmem:[#allocation2 + $0x68] sm:$0xff] %v150
    %155 = vst [vmem:[#allocation2 + $0x70] sm:$0xff] %v151
    %156 = vst [vmem:[#allocation2 + $0x78] sm:$0xff] %v152
    %157 = vst [vmem:[#allocation2 + $0x80] sm:$0xff] %v51
    %158 = vst [vmem:[#allocation2 + $0x88] sm:$0xff] %v52
    %159 = vst [vmem:[#allocation2 + $0x90] sm:$0xff] %v53
    %160 = vst [vmem:[#allocation2 + $0x98] sm:$0xff] %v54
    %161 = vrot.lane.b32.xlu0 %v51, 127
    %v162 = vpop.permute.xlu0 %161
    %163 = vrot.lane.b32.xlu0 %v52, 127
    %v164 = vpop.permute.xlu0 %163
    %165 = vrot.lane.b32.xlu0 %v53, 127
    %v166 = vpop.permute.xlu0 %165
    %167 = vrot.lane.b32.xlu0 %v54, 127
    %v168 = vpop.permute.xlu0 %167
    %vm169 = vcmp.lt.s32.totalorder %v64, 127
    %v170 = vsel %vm169, %v166, %v168
    %v171 = vsel %vm169, %v164, %v166
    %v172 = vsel %vm169, %v162, %v164
    %v173 = vsel %vm169, %v168, %v162
    %v174 = vld [vmem:[#allocation6 + $0xa0] sm:$0xff]
    %v175 = vld [vmem:[#allocation6 + $0xa8] sm:$0xff]
    %v176 = vld [vmem:[#allocation6 + $0xb0] sm:$0xff]
    %v177 = vld [vmem:[#allocation6 + $0xb8] sm:$0xff]
    %v178 = vmul.f32 %v172, %v174
    %v179 = vmul.f32 %v171, %v175
    %v180 = vmul.f32 %v170, %v176
    %v181 = vmul.f32 %v173, %v177
    %182 = vst [vmem:[#allocation2 + $0xa0] sm:$0xff] %v178
    %183 = vst [vmem:[#allocation2 + $0xa8] sm:$0xff] %v179
    %184 = vst [vmem:[#allocation2 + $0xb0] sm:$0xff] %v180
    %185 = vst [vmem:[#allocation2 + $0xb8] sm:$0xff] %v181
    %186 = vrot.lane.b32.xlu0 %v51, 113
    %v187 = vpop.permute.xlu0 %186
    %188 = vrot.lane.b32.xlu0 %v52, 113
    %v189 = vpop.permute.xlu0 %188
    %190 = vrot.lane.b32.xlu0 %v53, 113
    %v191 = vpop.permute.xlu0 %190
    %192 = vrot.lane.b32.xlu0 %v54, 113
    %v193 = vpop.permute.xlu0 %192
    %vm194 = vcmp.lt.s32.totalorder %v64, 113
    %v195 = vsel %vm194, %v191, %v193
    %v196 = vsel %vm194, %v189, %v191
    %v197 = vsel %vm194, %v187, %v189
    %v198 = vsel %vm194, %v193, %v187
    %v199 = vld [vmem:[#allocation6 + $0xc0] sm:$0xff]
    %v200 = vld [vmem:[#allocation6 + $0xc8] sm:$0xff]
    %v201 = vld [vmem:[#allocation6 + $0xd0] sm:$0xff]
    %v202 = vld [vmem:[#allocation6 + $0xd8] sm:$0xff]
    %v203 = vmul.f32 %v197, %v199
    %v204 = vmul.f32 %v196, %v200
    %v205 = vmul.f32 %v195, %v201
    %v206 = vmul.f32 %v198, %v202
    %207 = vst [vmem:[#allocation2 + $0xc0] sm:$0xff] %v203
    %208 = vst [vmem:[#allocation2 + $0xc8] sm:$0xff] %v204
    %209 = vst [vmem:[#allocation2 + $0xd0] sm:$0xff] %v205
    %210 = vst [vmem:[#allocation2 + $0xd8] sm:$0xff] %v206
    %211 = vrot.lane.b32.xlu0 %v51, 112
    %v212 = vpop.permute.xlu0 %211
    %213 = vrot.lane.b32.xlu0 %v52, 112
    %v214 = vpop.permute.xlu0 %213
    %215 = vrot.lane.b32.xlu0 %v53, 112
    %v216 = vpop.permute.xlu0 %215
    %217 = vrot.lane.b32.xlu0 %v54, 112
    %v218 = vpop.permute.xlu0 %217
    %vm219 = vcmp.lt.s32.totalorder %v64, 112
    %v220 = vsel %vm219, %v216, %v218
    %v221 = vsel %vm219, %v214, %v216
    %v222 = vsel %vm219, %v212, %v214
    %v223 = vsel %vm219, %v218, %v212
    %v224 = vld [vmem:[#allocation6 + $0xe0] sm:$0xff]
    %v225 = vld [vmem:[#allocation6 + $0xe8] sm:$0xff]
    %v226 = vld [vmem:[#allocation6 + $0xf0] sm:$0xff]
    %v227 = vld [vmem:[#allocation6 + $0xf8] sm:$0xff]
    %v228 = vmul.f32 %v222, %v224
    %v229 = vmul.f32 %v221, %v225
    %v230 = vmul.f32 %v220, %v226
    %v231 = vmul.f32 %v223, %v227
    %232 = vst [vmem:[#allocation2 + $0xe0] sm:$0xff] %v228
    %233 = vst [vmem:[#allocation2 + $0xe8] sm:$0xff] %v229
    %234 = vst [vmem:[#allocation2 + $0xf0] sm:$0xff] %v230
    %235 = vst [vmem:[#allocation2 + $0xf8] sm:$0xff] %v231
    %236 = vrot.lane.b32.xlu0 %v51, 111
    %v237 = vpop.permute.xlu0 %236
    %238 = vrot.lane.b32.xlu0 %v52, 111
    %v239 = vpop.permute.xlu0 %238
    %240 = vrot.lane.b32.xlu0 %v53, 111
    %v241 = vpop.permute.xlu0 %240
    %242 = vrot.lane.b32.xlu0 %v54, 111
    %v243 = vpop.permute.xlu0 %242
    %vm244 = vcmp.lt.s32.totalorder %v64, 111
    %v245 = vsel %vm244, %v241, %v243
    %v246 = vsel %vm244, %v239, %v241
    %v247 = vsel %vm244, %v237, %v239
    %v248 = vsel %vm244, %v243, %v237
    %v249 = vld [vmem:[#allocation6 + $0x100] sm:$0xff]
    %v250 = vld [vmem:[#allocation6 + $0x108] sm:$0xff]
    %v251 = vld [vmem:[#allocation6 + $0x110] sm:$0xff]
    %v252 = vld [vmem:[#allocation6 + $0x118] sm:$0xff]
    %v253 = vmul.f32 %v247, %v249
    %v254 = vmul.f32 %v246, %v250
    %v255 = vmul.f32 %v245, %v251
    %v256 = vmul.f32 %v248, %v252
    %257 = vst [vmem:[#allocation2 + $0x100] sm:$0xff] %v253
    %258 = vst [vmem:[#allocation2 + $0x108] sm:$0xff] %v254
    %259 = vst [vmem:[#allocation2 + $0x110] sm:$0xff] %v255
    %260 = vst [vmem:[#allocation2 + $0x118] sm:$0xff] %v256
    %v261 = vld [vmem:[%s2] sm:$0xf]
    %v262 = vld [vmem:[#allocation2] sm:$0xff]
    %v263 = vld [vmem:[#allocation2 + $0x8] sm:$0xff]
    %v264 = vld [vmem:[#allocation2 + $0x10] sm:$0xff]
    %v265 = vld [vmem:[#allocation2 + $0x18] sm:$0xff]
    %v266 = vld [vmem:[#allocation2 + $0x20] sm:$0xff]
    %v267 = vld [vmem:[#allocation2 + $0x28] sm:$0xff]
    %v268 = vld [vmem:[#allocation2 + $0x30] sm:$0xff]
    %v269 = vld [vmem:[#allocation2 + $0x38] sm:$0xff]
    %v270 = vld [vmem:[#allocation2 + $0x40] sm:$0xff]
    %v271 = vld [vmem:[#allocation2 + $0x48] sm:$0xff]
    %v272 = vld [vmem:[#allocation2 + $0x50] sm:$0xff]
    %v273 = vld [vmem:[#allocation2 + $0x58] sm:$0xff]
    %v274 = vld [vmem:[#allocation2 + $0x60] sm:$0xff]
    %v275 = vld [vmem:[#allocation2 + $0x68] sm:$0xff]
    %v276 = vld [vmem:[#allocation2 + $0x70] sm:$0xff]
    %v277 = vld [vmem:[#allocation2 + $0x78] sm:$0xff]
    %v278 = vld [vmem:[#allocation2 + $0x80] sm:$0xff]
    %v279 = vld [vmem:[#allocation2 + $0x88] sm:$0xff]
    %v280 = vld [vmem:[#allocation2 + $0x90] sm:$0xff]
    %v281 = vld [vmem:[#allocation2 + $0x98] sm:$0xff]
    %v282 = vld [vmem:[#allocation2 + $0xa0] sm:$0xff]
    %v283 = vld [vmem:[#allocation2 + $0xa8] sm:$0xff]
    %v284 = vld [vmem:[#allocation2 + $0xb0] sm:$0xff]
    %v285 = vld [vmem:[#allocation2 + $0xb8] sm:$0xff]
    %v286 = vld [vmem:[#allocation2 + $0xc0] sm:$0xff]
    %v287 = vld [vmem:[#allocation2 + $0xc8] sm:$0xff]
    %v288 = vld [vmem:[#allocation2 + $0xd0] sm:$0xff]
    %v289 = vld [vmem:[#allocation2 + $0xd8] sm:$0xff]
    %v290 = vld [vmem:[#allocation2 + $0xe0] sm:$0xff]
    %v291 = vld [vmem:[#allocation2 + $0xe8] sm:$0xff]
    %v292 = vld [vmem:[#allocation2 + $0xf0] sm:$0xff]
    %v293 = vld [vmem:[#allocation2 + $0xf8] sm:$0xff]
    %v294 = vld [vmem:[#allocation2 + $0x100] sm:$0xff]
    %v295 = vld [vmem:[#allocation2 + $0x108] sm:$0xff]
    %v296 = vld [vmem:[#allocation2 + $0x110] sm:$0xff]
    %v297 = vld [vmem:[#allocation2 + $0x118] sm:$0xff]
    %v298 = vpack.c.bf16 %v266, %v262
    %v299 = vpack.c.bf16 %v267, %v263
    %v300 = vpack.c.bf16 %v268, %v264
    %v301 = vpack.c.bf16 %v269, %v265
    %v302 = vpack.c.bf16 %v274, %v270
    %v303 = vpack.c.bf16 %v275, %v271
    %v304 = vpack.c.bf16 %v276, %v272
    %v305 = vpack.c.bf16 %v277, %v273
    %v306 = vpack.c.bf16 %v282, %v278
    %v307 = vpack.c.bf16 %v283, %v279
    %v308 = vpack.c.bf16 %v284, %v280
    %v309 = vpack.c.bf16 %v285, %v281
    %v310 = vpack.c.bf16 %v290, %v286
    %v311 = vpack.c.bf16 %v291, %v287
    %v312 = vpack.c.bf16 %v292, %v288
    %v313 = vpack.c.bf16 %v293, %v289
    %v314 = vpack.c.bf16 %v294, %v294
    %v315 = vpack.c.bf16 %v295, %v295
    %v316 = vpack.c.bf16 %v296, %v296
    %v317 = vpack.c.bf16 %v297, %v297
    %v318 = vld [vmem:[%s3] sm:$0xff]
    %320 = vset.pattern.permute.xlu0 0
    %321 = vperm.xlu0 %320, %v318
    %v322 = vpop.permute.xlu0 %321
    %vm324 = vcmask 588800
    %v326 = vsel %vm324, %v261, 0
    %vm328 = vcmask 1043456
    %v330 = vsel %vm328, %v314, 0
    %v333 = vsel %vm328, %v315, 0
    %v336 = vsel %vm328, %v316, 0
    %v339 = vsel %vm328, %v317, 0
    %341 = vmatprep.subr.bf16.mxu0 0
    %342 = vmatpush1.bf16.msra.mxu0 0
    %343 = vmatprep.subr.bf16.mxu0 0
    %344 = vmatpush1.bf16.msra.mxu0 0
    %345 = vmatprep.subr.bf16.mxu0 0
    %346 = vmatpush1.bf16.msra.mxu0 0
    %347 = vmatprep.subr.bf16.mxu0 %v333
    %348 = vmatpush1.bf16.msra.mxu0 %v330
    %349 = vmatprep.subr.bf16.mxu0 %v311
    %350 = vmatpush1.bf16.msra.mxu0 %v310
    %351 = vmatprep.subr.bf16.mxu0 %v307
    %352 = vmatpush1.bf16.msra.mxu0 %v306
    %353 = vmatprep.subr.bf16.mxu0 %v303
    %354 = vmatpush1.bf16.msra.mxu0 %v302
    %355 = vmatprep.subr.bf16.mxu0 %v299
    %356 = vmatpush1.bf16.msra.mxu0 %v298
    %357 = vmatprep.subr.bf16.mxu0 0
    %358 = vmatpush2.bf16.msra.mxu0 0
    %359 = vmatprep.subr.bf16.mxu0 0
    %360 = vmatpush2.bf16.msra.mxu0 0
    %361 = vmatprep.subr.bf16.mxu0 0
    %362 = vmatpush2.bf16.msra.mxu0 0
    %363 = vmatprep.subr.bf16.mxu0 0
    %364 = vmatpush2.bf16.msra.mxu0 0
    %365 = vmatprep.subr.bf16.mxu0 0
    %366 = vmatpush2.bf16.msra.mxu0 0
    %367 = vmatprep.subr.bf16.mxu0 0
    %368 = vmatpush2.bf16.msra.mxu0 0
    %369 = vmatprep.subr.bf16.mxu0 0
    %370 = vmatpush2.bf16.msra.mxu0 0
    %371 = vmatprep.subr.bf16.mxu0 0
    %372 = vmatpush2.bf16.msra.mxu0 0
    %373 = vmatprep.mubr.bf16.mxu0 0
    %374 = vmatmul.mubr.bf16.gmra.mxu0 %v326
    %v375 = vpop.f32.mrf.mxu0
    %v376 = vadd.f32 %v322, %v375
    %v377 = vpop.f32.mrf.mxu0
    %v378 = vadd.f32 %v322, %v377
    %v379 = vpop.f32.mrf.mxu0
    %v380 = vpop.f32.mrf.mxu0
    %381 = vdwg.mxu0
    %382 = vmatprep.subr.bf16.mxu0 0
    %383 = vmatpush1.bf16.msra.mxu0 0
    %384 = vmatprep.subr.bf16.mxu0 0
    %385 = vmatpush1.bf16.msra.mxu0 0
    %386 = vmatprep.subr.bf16.mxu0 0
    %387 = vmatpush1.bf16.msra.mxu0 0
    %388 = vmatprep.subr.bf16.mxu0 %v339
    %389 = vmatpush1.bf16.msra.mxu0 %v336
    %390 = vmatprep.subr.bf16.mxu0 %v313
    %391 = vmatpush1.bf16.msra.mxu0 %v312
    %392 = vmatprep.subr.bf16.mxu0 %v309
    %393 = vmatpush1.bf16.msra.mxu0 %v308
    %394 = vmatprep.subr.bf16.mxu0 %v305
    %395 = vmatpush1.bf16.msra.mxu0 %v304
    %396 = vmatprep.subr.bf16.mxu0 %v301
    %397 = vmatpush1.bf16.msra.mxu0 %v300
    %398 = vmatprep.subr.bf16.mxu0 0
    %399 = vmatpush2.bf16.msra.mxu0 0
    %400 = vmatprep.subr.bf16.mxu0 0
    %401 = vmatpush2.bf16.msra.mxu0 0
    %402 = vmatprep.subr.bf16.mxu0 0
    %403 = vmatpush2.bf16.msra.mxu0 0
    %404 = vmatprep.subr.bf16.mxu0 0
    %405 = vmatpush2.bf16.msra.mxu0 0
    %406 = vmatprep.subr.bf16.mxu0 0
    %407 = vmatpush2.bf16.msra.mxu0 0
    %408 = vmatprep.subr.bf16.mxu0 0
    %409 = vmatpush2.bf16.msra.mxu0 0
    %410 = vmatprep.subr.bf16.mxu0 0
    %411 = vmatpush2.bf16.msra.mxu0 0
    %412 = vmatprep.subr.bf16.mxu0 0
    %413 = vmatpush2.bf16.msra.mxu0 0
    %414 = vmatprep.mubr.bf16.mxu0 0
    %415 = vmatmul.mubr.bf16.gmra.mxu0 %v326
    %v416 = vpop.f32.mrf.mxu0
    %v417 = vadd.f32 %v322, %v416
    %v418 = vpop.f32.mrf.mxu0
    %v419 = vadd.f32 %v322, %v418
    %v420 = vpop.f32.mrf.mxu0
    %v421 = vpop.f32.mrf.mxu0
    %422 = vdwg.mxu0
    %v423 = vmax.f32 %v376, 0.0
    %v424 = vmax.f32 %v378, 0.0
    %v425 = vmax.f32 %v417, 0.0
    %v426 = vmax.f32 %v419, 0.0
    %427 = vrot.lane.b32.xlu0 %v423, 17
    %v428 = vpop.permute.xlu0 %427
    %429 = vrot.lane.b32.xlu0 %v424, 17
    %v430 = vpop.permute.xlu0 %429
    %431 = vrot.lane.b32.xlu0 %v425, 17
    %v432 = vpop.permute.xlu0 %431
    %433 = vrot.lane.b32.xlu0 %v426, 17
    %v434 = vpop.permute.xlu0 %433
    %v435 = vsel %vm65, %v432, %v434
    %v436 = vsel %vm65, %v430, %v432
    %v437 = vsel %vm65, %v428, %v430
    %v438 = vsel %vm65, %v434, %v428
    %v439 = vld [vmem:[#allocation6] sm:$0xff]
    %v440 = vld [vmem:[#allocation6 + $0x8] sm:$0xff]
    %v441 = vld [vmem:[#allocation6 + $0x10] sm:$0xff]
    %v442 = vld [vmem:[#allocation6 + $0x18] sm:$0xff]
    %v443 = vmul.f32 %v438, %v439
    %v444 = vmul.f32 %v437, %v440
    %v445 = vmul.f32 %v436, %v441
    %v446 = vmul.f32 %v435, %v442
    %447 = vst [vmem:[#allocation2] sm:$0xff] %v443
    %448 = vst [vmem:[#allocation2 + $0x8] sm:$0xff] %v444
    %449 = vst [vmem:[#allocation2 + $0x10] sm:$0xff] %v445
    %450 = vst [vmem:[#allocation2 + $0x18] sm:$0xff] %v446
    %451 = vrot.lane.b32.xlu0 %v423, 16
    %v452 = vpop.permute.xlu0 %451
    %453 = vrot.lane.b32.xlu0 %v424, 16
    %v454 = vpop.permute.xlu0 %453
    %455 = vrot.lane.b32.xlu0 %v425, 16
    %v456 = vpop.permute.xlu0 %455
    %457 = vrot.lane.b32.xlu0 %v426, 16
    %v458 = vpop.permute.xlu0 %457
    %v459 = vsel %vm90, %v456, %v458
    %v460 = vsel %vm90, %v454, %v456
    %v461 = vsel %vm90, %v452, %v454
    %v462 = vsel %vm90, %v458, %v452
    %v463 = vld [vmem:[#allocation6 + $0x20] sm:$0xff]
    %v464 = vld [vmem:[#allocation6 + $0x28] sm:$0xff]
    %v465 = vld [vmem:[#allocation6 + $0x30] sm:$0xff]
    %v466 = vld [vmem:[#allocation6 + $0x38] sm:$0xff]
    %v467 = vmul.f32 %v462, %v463
    %v468 = vmul.f32 %v461, %v464
    %v469 = vmul.f32 %v460, %v465
    %v470 = vmul.f32 %v459, %v466
    %471 = vst [vmem:[#allocation2 + $0x20] sm:$0xff] %v467
    %472 = vst [vmem:[#allocation2 + $0x28] sm:$0xff] %v468
    %473 = vst [vmem:[#allocation2 + $0x30] sm:$0xff] %v469
    %474 = vst [vmem:[#allocation2 + $0x38] sm:$0xff] %v470
    %475 = vrot.lane.b32.xlu0 %v423, 15
    %v476 = vpop.permute.xlu0 %475
    %477 = vrot.lane.b32.xlu0 %v424, 15
    %v478 = vpop.permute.xlu0 %477
    %479 = vrot.lane.b32.xlu0 %v425, 15
    %v480 = vpop.permute.xlu0 %479
    %481 = vrot.lane.b32.xlu0 %v426, 15
    %v482 = vpop.permute.xlu0 %481
    %v483 = vsel %vm115, %v480, %v482
    %v484 = vsel %vm115, %v478, %v480
    %v485 = vsel %vm115, %v476, %v478
    %v486 = vsel %vm115, %v482, %v476
    %v487 = vld [vmem:[#allocation6 + $0x40] sm:$0xff]
    %v488 = vld [vmem:[#allocation6 + $0x48] sm:$0xff]
    %v489 = vld [vmem:[#allocation6 + $0x50] sm:$0xff]
    %v490 = vld [vmem:[#allocation6 + $0x58] sm:$0xff]
    %v491 = vmul.f32 %v486, %v487
    %v492 = vmul.f32 %v485, %v488
    %v493 = vmul.f32 %v484, %v489
    %v494 = vmul.f32 %v483, %v490
    %495 = vst [vmem:[#allocation2 + $0x40] sm:$0xff] %v491
    %496 = vst [vmem:[#allocation2 + $0x48] sm:$0xff] %v492
    %497 = vst [vmem:[#allocation2 + $0x50] sm:$0xff] %v493
    %498 = vst [vmem:[#allocation2 + $0x58] sm:$0xff] %v494
    %499 = vrot.lane.b32.xlu0 %v423, 1
    %v500 = vpop.permute.xlu0 %499
    %501 = vrot.lane.b32.xlu0 %v424, 1
    %v502 = vpop.permute.xlu0 %501
    %503 = vrot.lane.b32.xlu0 %v425, 1
    %v504 = vpop.permute.xlu0 %503
    %505 = vrot.lane.b32.xlu0 %v426, 1
    %v506 = vpop.permute.xlu0 %505
    %v507 = vsel %vm140, %v504, %v506
    %v508 = vsel %vm140, %v502, %v504
    %v509 = vsel %vm140, %v500, %v502
    %v510 = vsel %vm140, %v506, %v500
    %v511 = vld [vmem:[#allocation6 + $0x60] sm:$0xff]
    %v512 = vld [vmem:[#allocation6 + $0x68] sm:$0xff]
    %v513 = vld [vmem:[#allocation6 + $0x70] sm:$0xff]
    %v514 = vld [vmem:[#allocation6 + $0x78] sm:$0xff]
    %v515 = vmul.f32 %v510, %v511
    %v516 = vmul.f32 %v509, %v512
    %v517 = vmul.f32 %v508, %v513
    %v518 = vmul.f32 %v507, %v514
    %519 = vst [vmem:[#allocation2 + $0x60] sm:$0xff] %v515
    %520 = vst [vmem:[#allocation2 + $0x68] sm:$0xff] %v516
    %521 = vst [vmem:[#allocation2 + $0x70] sm:$0xff] %v517
    %522 = vst [vmem:[#allocation2 + $0x78] sm:$0xff] %v518
    %523 = vst [vmem:[#allocation2 + $0x80] sm:$0xff] %v423
    %524 = vst [vmem:[#allocation2 + $0x88] sm:$0xff] %v424
    %525 = vst [vmem:[#allocation2 + $0x90] sm:$0xff] %v425
    %526 = vst [vmem:[#allocation2 + $0x98] sm:$0xff] %v426
    %527 = vrot.lane.b32.xlu0 %v423, 127
    %v528 = vpop.permute.xlu0 %527
    %529 = vrot.lane.b32.xlu0 %v424, 127
    %v530 = vpop.permute.xlu0 %529
    %531 = vrot.lane.b32.xlu0 %v425, 127
    %v532 = vpop.permute.xlu0 %531
    %533 = vrot.lane.b32.xlu0 %v426, 127
    %v534 = vpop.permute.xlu0 %533
    %v535 = vsel %vm169, %v532, %v534
    %v536 = vsel %vm169, %v530, %v532
    %v537 = vsel %vm169, %v528, %v530
    %v538 = vsel %vm169, %v534, %v528
    %v539 = vld [vmem:[#allocation6 + $0xa0] sm:$0xff]
    %v540 = vld [vmem:[#allocation6 + $0xa8] sm:$0xff]
    %v541 = vld [vmem:[#allocation6 + $0xb0] sm:$0xff]
    %v542 = vld [vmem:[#allocation6 + $0xb8] sm:$0xff]
    %v543 = vmul.f32 %v537, %v539
    %v544 = vmul.f32 %v536, %v540
    %v545 = vmul.f32 %v535, %v541
    %v546 = vmul.f32 %v538, %v542
    %547 = vst [vmem:[#allocation2 + $0xa0] sm:$0xff] %v543
    %548 = vst [vmem:[#allocation2 + $0xa8] sm:$0xff] %v544
    %549 = vst [vmem:[#allocation2 + $0xb0] sm:$0xff] %v545
    %550 = vst [vmem:[#allocation2 + $0xb8] sm:$0xff] %v546
    %551 = vrot.lane.b32.xlu0 %v423, 113
    %v552 = vpop.permute.xlu0 %551
    %553 = vrot.lane.b32.xlu0 %v424, 113
    %v554 = vpop.permute.xlu0 %553
    %555 = vrot.lane.b32.xlu0 %v425, 113
    %v556 = vpop.permute.xlu0 %555
    %557 = vrot.lane.b32.xlu0 %v426, 113
    %v558 = vpop.permute.xlu0 %557
    %v559 = vsel %vm194, %v556, %v558
    %v560 = vsel %vm194, %v554, %v556
    %v561 = vsel %vm194, %v552, %v554
    %v562 = vsel %vm194, %v558, %v552
    %v563 = vld [vmem:[#allocation6 + $0xc0] sm:$0xff]
    %v564 = vld [vmem:[#allocation6 + $0xc8] sm:$0xff]
    %v565 = vld [vmem:[#allocation6 + $0xd0] sm:$0xff]
    %v566 = vld [vmem:[#allocation6 + $0xd8] sm:$0xff]
    %v567 = vmul.f32 %v561, %v563
    %v568 = vmul.f32 %v560, %v564
    %v569 = vmul.f32 %v559, %v565
    %v570 = vmul.f32 %v562, %v566
    %571 = vst [vmem:[#allocation2 + $0xc0] sm:$0xff] %v567
    %572 = vst [vmem:[#allocation2 + $0xc8] sm:$0xff] %v568
    %573 = vst [vmem:[#allocation2 + $0xd0] sm:$0xff] %v569
    %574 = vst [vmem:[#allocation2 + $0xd8] sm:$0xff] %v570
    %575 = vrot.lane.b32.xlu0 %v423, 112
    %v576 = vpop.permute.xlu0 %575
    %577 = vrot.lane.b32.xlu0 %v424, 112
    %v578 = vpop.permute.xlu0 %577
    %579 = vrot.lane.b32.xlu0 %v425, 112
    %v580 = vpop.permute.xlu0 %579
    %581 = vrot.lane.b32.xlu0 %v426, 112
    %v582 = vpop.permute.xlu0 %581
    %v583 = vsel %vm219, %v580, %v582
    %v584 = vsel %vm219, %v578, %v580
    %v585 = vsel %vm219, %v576, %v578
    %v586 = vsel %vm219, %v582, %v576
    %v587 = vld [vmem:[#allocation6 + $0xe0] sm:$0xff]
    %v588 = vld [vmem:[#allocation6 + $0xe8] sm:$0xff]
    %v589 = vld [vmem:[#allocation6 + $0xf0] sm:$0xff]
    %v590 = vld [vmem:[#allocation6 + $0xf8] sm:$0xff]
    %v591 = vmul.f32 %v585, %v587
    %v592 = vmul.f32 %v584, %v588
    %v593 = vmul.f32 %v583, %v589
    %v594 = vmul.f32 %v586, %v590
    %595 = vst [vmem:[#allocation2 + $0xe0] sm:$0xff] %v591
    %596 = vst [vmem:[#allocation2 + $0xe8] sm:$0xff] %v592
    %597 = vst [vmem:[#allocation2 + $0xf0] sm:$0xff] %v593
    %598 = vst [vmem:[#allocation2 + $0xf8] sm:$0xff] %v594
    %599 = vrot.lane.b32.xlu0 %v423, 111
    %v600 = vpop.permute.xlu0 %599
    %601 = vrot.lane.b32.xlu0 %v424, 111
    %v602 = vpop.permute.xlu0 %601
    %603 = vrot.lane.b32.xlu0 %v425, 111
    %v604 = vpop.permute.xlu0 %603
    %605 = vrot.lane.b32.xlu0 %v426, 111
    %v606 = vpop.permute.xlu0 %605
    %v607 = vsel %vm244, %v604, %v606
    %v608 = vsel %vm244, %v602, %v604
    %v609 = vsel %vm244, %v600, %v602
    %v610 = vsel %vm244, %v606, %v600
    %v611 = vld [vmem:[#allocation6 + $0x100] sm:$0xff]
    %v612 = vld [vmem:[#allocation6 + $0x108] sm:$0xff]
    %v613 = vld [vmem:[#allocation6 + $0x110] sm:$0xff]
    %v614 = vld [vmem:[#allocation6 + $0x118] sm:$0xff]
    %v615 = vmul.f32 %v609, %v611
    %v616 = vmul.f32 %v608, %v612
    %v617 = vmul.f32 %v607, %v613
    %v618 = vmul.f32 %v610, %v614
    %619 = vst [vmem:[#allocation2 + $0x100] sm:$0xff] %v615
    %620 = vst [vmem:[#allocation2 + $0x108] sm:$0xff] %v616
    %621 = vst [vmem:[#allocation2 + $0x110] sm:$0xff] %v617
    %622 = vst [vmem:[#allocation2 + $0x118] sm:$0xff] %v618
    %v623 = vld [vmem:[%s4] sm:$0xf]
    %v624 = vld [vmem:[#allocation2] sm:$0xff]
    %v625 = vld [vmem:[#allocation2 + $0x8] sm:$0xff]
    %v626 = vld [vmem:[#allocation2 + $0x10] sm:$0xff]
    %v627 = vld [vmem:[#allocation2 + $0x18] sm:$0xff]
    %v628 = vld [vmem:[#allocation2 + $0x20] sm:$0xff]
    %v629 = vld [vmem:[#allocation2 + $0x28] sm:$0xff]
    %v630 = vld [vmem:[#allocation2 + $0x30] sm:$0xff]
    %v631 = vld [vmem:[#allocation2 + $0x38] sm:$0xff]
    %v632 = vld [vmem:[#allocation2 + $0x40] sm:$0xff]
    %v633 = vld [vmem:[#allocation2 + $0x48] sm:$0xff]
    %v634 = vld [vmem:[#allocation2 + $0x50] sm:$0xff]
    %v635 = vld [vmem:[#allocation2 + $0x58] sm:$0xff]
    %v636 = vld [vmem:[#allocation2 + $0x60] sm:$0xff]
    %v637 = vld [vmem:[#allocation2 + $0x68] sm:$0xff]
    %v638 = vld [vmem:[#allocation2 + $0x70] sm:$0xff]
    %v639 = vld [vmem:[#allocation2 + $0x78] sm:$0xff]
    %v640 = vld [vmem:[#allocation2 + $0x80] sm:$0xff]
    %v641 = vld [vmem:[#allocation2 + $0x88] sm:$0xff]
    %v642 = vld [vmem:[#allocation2 + $0x90] sm:$0xff]
    %v643 = vld [vmem:[#allocation2 + $0x98] sm:$0xff]
    %v644 = vld [vmem:[#allocation2 + $0xa0] sm:$0xff]
    %v645 = vld [vmem:[#allocation2 + $0xa8] sm:$0xff]
    %v646 = vld [vmem:[#allocation2 + $0xb0] sm:$0xff]
    %v647 = vld [vmem:[#allocation2 + $0xb8] sm:$0xff]
    %v648 = vld [vmem:[#allocation2 + $0xc0] sm:$0xff]
    %v649 = vld [vmem:[#allocation2 + $0xc8] sm:$0xff]
    %v650 = vld [vmem:[#allocation2 + $0xd0] sm:$0xff]
    %v651 = vld [vmem:[#allocation2 + $0xd8] sm:$0xff]
    %v652 = vld [vmem:[#allocation2 + $0xe0] sm:$0xff]
    %v653 = vld [vmem:[#allocation2 + $0xe8] sm:$0xff]
    %v654 = vld [vmem:[#allocation2 + $0xf0] sm:$0xff]
    %v655 = vld [vmem:[#allocation2 + $0xf8] sm:$0xff]
    %v656 = vld [vmem:[#allocation2 + $0x100] sm:$0xff]
    %v657 = vld [vmem:[#allocation2 + $0x108] sm:$0xff]
    %v658 = vld [vmem:[#allocation2 + $0x110] sm:$0xff]
    %v659 = vld [vmem:[#allocation2 + $0x118] sm:$0xff]
    %v660 = vpack.c.bf16 %v628, %v624
    %v661 = vpack.c.bf16 %v629, %v625
    %v662 = vpack.c.bf16 %v630, %v626
    %v663 = vpack.c.bf16 %v631, %v627
    %v664 = vpack.c.bf16 %v636, %v632
    %v665 = vpack.c.bf16 %v637, %v633
    %v666 = vpack.c.bf16 %v638, %v634
    %v667 = vpack.c.bf16 %v639, %v635
    %v668 = vpack.c.bf16 %v644, %v640
    %v669 = vpack.c.bf16 %v645, %v641
    %v670 = vpack.c.bf16 %v646, %v642
    %v671 = vpack.c.bf16 %v647, %v643
    %v672 = vpack.c.bf16 %v652, %v648
    %v673 = vpack.c.bf16 %v653, %v649
    %v674 = vpack.c.bf16 %v654, %v650
    %v675 = vpack.c.bf16 %v655, %v651
    %v676 = vpack.c.bf16 %v656, %v656
    %v677 = vpack.c.bf16 %v657, %v657
    %v678 = vpack.c.bf16 %v658, %v658
    %v679 = vpack.c.bf16 %v659, %v659
    %v680 = vld [vmem:[%s5] sm:$0xff]
    %682 = vset.pattern.permute.xlu0 0
    %683 = vperm.xlu0 %682, %v680
    %v684 = vpop.permute.xlu0 %683
    %v687 = vsel %vm324, %v623, 0
    %v690 = vsel %vm328, %v676, 0
    %v693 = vsel %vm328, %v677, 0
    %v696 = vsel %vm328, %v678, 0
    %v699 = vsel %vm328, %v679, 0
    %701 = vmatprep.subr.bf16.mxu0 0
    %702 = vmatpush1.bf16.msra.mxu0 0
    %703 = vmatprep.subr.bf16.mxu0 0
    %704 = vmatpush1.bf16.msra.mxu0 0
    %705 = vmatprep.subr.bf16.mxu0 0
    %706 = vmatpush1.bf16.msra.mxu0 0
    %707 = vmatprep.subr.bf16.mxu0 %v693
    %708 = vmatpush1.bf16.msra.mxu0 %v690
    %709 = vmatprep.subr.bf16.mxu0 %v673
    %710 = vmatpush1.bf16.msra.mxu0 %v672
    %711 = vmatprep.subr.bf16.mxu0 %v669
    %712 = vmatpush1.bf16.msra.mxu0 %v668
    %713 = vmatprep.subr.bf16.mxu0 %v665
    %714 = vmatpush1.bf16.msra.mxu0 %v664
    %715 = vmatprep.subr.bf16.mxu0 %v661
    %716 = vmatpush1.bf16.msra.mxu0 %v660
    %717 = vmatprep.subr.bf16.mxu0 0
    %718 = vmatpush2.bf16.msra.mxu0 0
    %719 = vmatprep.subr.bf16.mxu0 0
    %720 = vmatpush2.bf16.msra.mxu0 0
    %721 = vmatprep.subr.bf16.mxu0 0
    %722 = vmatpush2.bf16.msra.mxu0 0
    %723 = vmatprep.subr.bf16.mxu0 0
    %724 = vmatpush2.bf16.msra.mxu0 0
    %725 = vmatprep.subr.bf16.mxu0 0
    %726 = vmatpush2.bf16.msra.mxu0 0
    %727 = vmatprep.subr.bf16.mxu0 0
    %728 = vmatpush2.bf16.msra.mxu0 0
    %729 = vmatprep.subr.bf16.mxu0 0
    %730 = vmatpush2.bf16.msra.mxu0 0
    %731 = vmatprep.subr.bf16.mxu0 0
    %732 = vmatpush2.bf16.msra.mxu0 0
    %733 = vmatprep.mubr.bf16.mxu0 0
    %734 = vmatmul.mubr.bf16.gmra.mxu0 %v687
    %v735 = vpop.f32.mrf.mxu0
    %v736 = vadd.f32 %v684, %v735
    %v737 = vpop.f32.mrf.mxu0
    %v738 = vadd.f32 %v684, %v737
    %v739 = vpop.f32.mrf.mxu0
    %v740 = vpop.f32.mrf.mxu0
    %741 = vdwg.mxu0
    %742 = vmatprep.subr.bf16.mxu0 0
    %743 = vmatpush1.bf16.msra.mxu0 0
    %744 = vmatprep.subr.bf16.mxu0 0
    %745 = vmatpush1.bf16.msra.mxu0 0
    %746 = vmatprep.subr.bf16.mxu0 0
    %747 = vmatpush1.bf16.msra.mxu0 0
    %748 = vmatprep.subr.bf16.mxu0 %v699
    %749 = vmatpush1.bf16.msra.mxu0 %v696
    %750 = vmatprep.subr.bf16.mxu0 %v675
    %751 = vmatpush1.bf16.msra.mxu0 %v674
    %752 = vmatprep.subr.bf16.mxu0 %v671
    %753 = vmatpush1.bf16.msra.mxu0 %v670
    %754 = vmatprep.subr.bf16.mxu0 %v667
    %755 = vmatpush1.bf16.msra.mxu0 %v666
    %756 = vmatprep.subr.bf16.mxu0 %v663
    %757 = vmatpush1.bf16.msra.mxu0 %v662
    %758 = vmatprep.subr.bf16.mxu0 0
    %759 = vmatpush2.bf16.msra.mxu0 0
    %760 = vmatprep.subr.bf16.mxu0 0
    %761 = vmatpush2.bf16.msra.mxu0 0
    %762 = vmatprep.subr.bf16.mxu0 0
    %763 = vmatpush2.bf16.msra.mxu0 0
    %764 = vmatprep.subr.bf16.mxu0 0
    %765 = vmatpush2.bf16.msra.mxu0 0
    %766 = vmatprep.subr.bf16.mxu0 0
    %767 = vmatpush2.bf16.msra.mxu0 0
    %768 = vmatprep.subr.bf16.mxu0 0
    %769 = vmatpush2.bf16.msra.mxu0 0
    %770 = vmatprep.subr.bf16.mxu0 0
    %771 = vmatpush2.bf16.msra.mxu0 0
    %772 = vmatprep.subr.bf16.mxu0 0
    %773 = vmatpush2.bf16.msra.mxu0 0
    %774 = vmatprep.mubr.bf16.mxu0 0
    %775 = vmatmul.mubr.bf16.gmra.mxu0 %v687
    %v776 = vpop.f32.mrf.mxu0
    %v777 = vadd.f32 %v684, %v776
    %v778 = vpop.f32.mrf.mxu0
    %v779 = vadd.f32 %v684, %v778
    %v780 = vpop.f32.mrf.mxu0
    %v781 = vpop.f32.mrf.mxu0
    %782 = vdwg.mxu0
    %v783 = vadd.f32 %v736, %v51
    %v784 = vadd.f32 %v738, %v52
    %v785 = vadd.f32 %v777, %v53
    %v786 = vadd.f32 %v779, %v54
    %v787 = vmax.f32 %v783, 0.0
    %v788 = vmax.f32 %v784, 0.0
    %v789 = vmax.f32 %v785, 0.0
    %v790 = vmax.f32 %v786, 0.0
    %791 = vst [vmem:[#allocation8] sm:$0xff] %v787
    %792 = vst [vmem:[#allocation8 + $0x8] sm:$0xff] %v788
    %793 = vst [vmem:[#allocation8 + $0x10] sm:$0xff] %v789
    %794 = vst [vmem:[#allocation8 + $0x18] sm:$0xff] %v790
    // Predicated region
    $region34: #{tpu_custom_call.1} parent=1 // pred_check
      _
    $region35: #{tpu_custom_call.1} parent=1 // pred_check_branch
      %796 = sbr.rel (0) target = $region37
    $region36: #{tpu_custom_call.1} parent=1 // pred_region
      %s798 = ssub.s32 512, 512
      %799 = vsyncadd [#allocation5], %s798
      %s801 = sshll.u32 [#allocation8], 4
      %s802 = int_to_ptr.vmem [resolvable:$true] %s801
      %804 = dma.vmem_to_hbm [thread:$0]  %s802, 512, %s6, [#allocation5]
    $region37: #{tpu_custom_call.1} parent=1 // pred_fallthru
      _
    // Predicated region
    $region38: #{tpu_custom_call.1} parent=1 // pred_check
      _
    $region39: #{tpu_custom_call.1} parent=1 // pred_check_branch
      %806 = sbr.rel (0) target = $region41
    $region40: #{tpu_custom_call.1} parent=1 // pred_region
      %807 = dma.done [#allocation5], 512
    $region41: #{tpu_custom_call.1} parent=1 // pred_fallthru
      _
    %808 = vsyncpa [#allocation4], 1
    %809 = vsyncpa [#allocation7], 1
    %810 = vsyncpa [#allocation5], 1

</llo_original>
